<compile_context>
chip_gen: v7x
topology: tpu7x:2x2x1
jax: 0.10.0
libtpu: 0.0.40
codegen_flags: <defaults>
</compile_context>

<pallas_src>
import functools
import math

import numpy as np
import jax
import jax.numpy as jnp
from jax import lax
from jax.experimental import pallas as pl
from jax.experimental.pallas import tpu as pltpu

SENTINEL = 0.1337
NEG_INF = -1.0e9


def _required_padding(dim, target_div):
    return 0 if dim % target_div == 0 else target_div - dim % target_div


# ------------------------- kernel 1: LayerNorm + QKV ------------------------ #
def _ln_qkv_kernel(x_ref, g_ref, b_ref, w_ref, bqkv_ref, qkv_ref):
    """qkv[:, j-tile] = (LayerNorm(x) @ Wqkv + bqkv)[:, j-tile]   (bf16 out)."""
    x = x_ref[...]
    mu = jnp.mean(x, axis=-1, keepdims=True)
    var = jnp.mean(jnp.square(x - mu), axis=-1, keepdims=True)
    xn = (x - mu) * lax.rsqrt(var + 1e-5)
    xn = (xn * g_ref[...] + b_ref[...]).astype(jnp.bfloat16)
    acc = jnp.dot(xn, w_ref[...], preferred_element_type=jnp.float32)
    qkv_ref[...] = (acc + bqkv_ref[...]).astype(qkv_ref.dtype)


def _pallas_ln_qkv(x2d, wqkv_t, bqkv, ln_g, ln_b, *, row_tile=512, col_tile=2048):
    # row_tile=512 targets the measured ~85% HBM roofline on v5e/v6e; at very
    # large E on v7x (64 MiB VMEM) drop row_tile/col_tile further.
    n, e = x2d.shape
    e3 = wqkv_t.shape[1]
    br = min(row_tile, n)
    tn = min(col_tile, e3)
    grid = (pl.cdiv(e3, tn), pl.cdiv(n, br))   # column tiles OUTER, rows inner:
    return pl.pallas_call(                     # the weight block is re-fetched
        _ln_qkv_kernel,                        # only when the column tile moves.
        grid=grid,
        in_specs=[
            pl.BlockSpec((br, e), lambda j, i: (i, 0)),
            pl.BlockSpec((1, e), lambda j, i: (0, 0)),
            pl.BlockSpec((1, e), lambda j, i: (0, 0)),
            pl.BlockSpec((e, tn), lambda j, i: (0, j)),
            pl.BlockSpec((1, tn), lambda j, i: (0, j)),
        ],
        out_specs=pl.BlockSpec((br, tn), lambda j, i: (i, j)),
        out_shape=jax.ShapeDtypeStruct((n, e3), jnp.bfloat16),
        compiler_params=pltpu.CompilerParams(
            dimension_semantics=("parallel", "parallel"),
            vmem_limit_bytes=48 * 1024 * 1024),
    )(x2d, ln_g, ln_b, wqkv_t, bqkv)


# ------------- kernel 2: strided attention + projection + residual ---------- #
def _attn_proj_kernel(qkv_ref, bias_ref, x_ref, wp_ref, bp_ref, o_ref, kv_prev,
                      *, e, nhead):
    """One (batch, time-chunk) block.

    qkv_ref : (1, 1, R, 3E) bf16  current chunk QKV rows, R = maxlen*stride
    bias_ref: (1, R, 2R)   f32    band-causal x same-stride x key-validity mask
    x_ref   : (1, 1, R, E) f32    residual input rows
    wp_ref  : (E, E)       bf16   output projection weight (pre-transposed)
    bp_ref  : (1, E)       f32    output projection bias
    o_ref   : (1, 1, R, E) f32    final layer output rows
    kv_prev : (R, 2E) bf16 VMEM   previous chunk's K,V carried across grid steps
    """
    ci = pl.program_id(1)

    @pl.when(ci == 0)
    def _():
        # First chunk of a batch element: no previous chunk (bias fully masks
        # it, matching the SENTINEL front padding); zero to avoid NaN garbage.
        kv_prev[...] = jnp.zeros_like(kv_prev)

    cur = qkv_ref[0, 0]                                            # (R, 3E)
    kv_cat = jnp.concatenate([kv_prev[...], cur[:, e:]], axis=0)   # (2R, 2E)
    bias = bias_ref[0]                                             # (R, 2R)
    qd = e // nhead
    scale = 1.0 / math.sqrt(qd)
    nt = (((1,), (1,)), ((), ()))                                  # Q @ K^T

    acc = x_ref[0, 0] + bp_ref[...]                                # (R, E) f32
    for h in range(nhead):
        c0 = h * qd
        q = cur[:, c0:c0 + qd]                                     # (R, qd)
        k = kv_cat[:, c0:c0 + qd]                                  # (2R, qd)
        v = kv_cat[:, e + c0:e + c0 + qd]                          # (2R, qd)
        logits = lax.dot_general(q, k, nt,
                                 preferred_element_type=jnp.float32)
        logits = logits * scale + bias
        m = jnp.max(logits, axis=-1, keepdims=True)
        p = jnp.exp(logits - m)
        inv = pl.reciprocal(jnp.sum(p, axis=-1, keepdims=True), approx=True)
        a_h = jnp.dot(p.astype(jnp.bfloat16), v,
                      preferred_element_type=jnp.float32) * inv
        # Fused output projection: A @ Wp == sum_h A_h @ Wp[h*qd:(h+1)*qd, :].
        acc = acc + jnp.dot(a_h.astype(jnp.bfloat16), wp_ref[c0:c0 + qd, :],
                            preferred_element_type=jnp.float32)
    o_ref[0, 0] = acc.astype(o_ref.dtype)                 # one lane-dense store
    kv_prev[...] = cur[:, e:]                             # becomes prev for ci+1


def _pallas_attn_proj(qkv4, bias3, x4, wp_t, bp, *, nhead):
    b, n_chunks, r_sz, e3 = qkv4.shape
    e = e3 // 3
    last = n_chunks - 1
    kernel = functools.partial(_attn_proj_kernel, e=e, nhead=nhead)

    def bias_map(bi, ci):
        cat = jnp.where(ci == 0, 0, jnp.where(ci == last, 2, 1))
        return (cat, 0, 0)

    return pl.pallas_call(
        kernel,
        grid=(b, n_chunks),
        in_specs=[
            pl.BlockSpec((1, 1, r_sz, e3), lambda bi, ci: (bi, ci, 0, 0)),
            pl.BlockSpec((1, r_sz, 2 * r_sz), bias_map),
            pl.BlockSpec((1, 1, r_sz, e), lambda bi, ci: (bi, ci, 0, 0)),
            pl.BlockSpec((e, e), lambda bi, ci: (0, 0)),
            pl.BlockSpec((1, e), lambda bi, ci: (0, 0)),
        ],
        out_specs=pl.BlockSpec((1, 1, r_sz, e), lambda bi, ci: (bi, ci, 0, 0)),
        out_shape=jax.ShapeDtypeStruct((b, n_chunks, r_sz, e), jnp.float32),
        scratch_shapes=[pltpu.VMEM((r_sz, 2 * e), jnp.bfloat16)],
        compiler_params=pltpu.CompilerParams(
            dimension_semantics=("parallel", "arbitrary"),
            vmem_limit_bytes=48 * 1024 * 1024),
    )(qkv4, bias3, x4, wp_t, bp)


# ------------------ static mask (band + stride + validity) ------------------ #
def _make_attn_bias(n_chunks, maxlen, stride, t_valid):
    """Additive mask (3, R, 2R): entry 0 = first chunk (prev keys fully masked,
    == SENTINEL front padding), entry 2 = last chunk (end-padding keys masked),
    entry 1 = any middle chunk.  Built in numpy -> trace-time constant."""
    r_sz = maxlen * stride
    cis = np.array([0, min(1, n_chunks - 1), n_chunks - 1]).reshape(3, 1, 1)
    r = np.arange(r_sz).reshape(1, r_sz, 1)
    c = np.arange(2 * r_sz).reshape(1, 1, 2 * r_sz)
    m_q, s_q = r // stride, r % stride
    part, rrk = c // r_sz, c % r_sz
    m_k, s_k = rrk // stride, rrk % stride
    p = part * maxlen + m_k                       # key super-step in 2-chunk window
    band = (p <= m_q + maxlen) & (p >= m_q + 1) & (s_k == s_q)
    key_st = cis * maxlen + p - maxlen            # global key super-step
    key_ok = (key_st >= 0) & (key_st * stride + s_k < t_valid)
    return jnp.asarray(np.where(band & key_ok, 0.0, NEG_INF).astype(np.float32))


# ------------------------- one-time parameter prep -------------------------- #
def prepare_params(params):
    """Hoisted out of the jitted forward: transpose / fuse / bf16-cast weights."""
    e = params['wq'].shape[1]
    wqkv_t = jnp.concatenate(
        [params['wq'].T, params['wk'].T, params['wv'].T], axis=1)       # [E, 3E]
    bqkv = jnp.concatenate(
        [params['bq'], jnp.zeros((2 * e,), jnp.float32)]).reshape(1, 3 * e)
    return dict(
        ln_g=params['ln_g'].reshape(1, e).astype(jnp.float32),
        ln_b=params['ln_b'].reshape(1, e).astype(jnp.float32),
        wqkv_t=wqkv_t.astype(jnp.bfloat16),
        bqkv=bqkv.astype(jnp.float32),
        wp_t=params['wp'].T.astype(jnp.bfloat16),
        bp=params['bp'].reshape(1, e).astype(jnp.float32),
    )


# ------------------------------ Pallas forward ------------------------------ #
def pallas_forward(x_bte, prep, *, nhead, stride, maxlen):
    b, ttot, e = x_bte.shape
    # StridedAttn chunk geometry (all static).
    t0 = (ttot + _required_padding(ttot, stride)) // stride
    t0p = t0 + _required_padding(t0, maxlen)
    n_chunks = t0p // maxlen
    tp = t0p * stride
    r_sz = maxlen * stride

    x_pad = x_bte if tp == ttot else jnp.pad(
        x_bte, ((0, 0), (0, tp - ttot), (0, 0)))
    x2d = x_pad.reshape(b * tp, e)

    qkv2d = _pallas_ln_qkv(x2d, prep['wqkv_t'], prep['bqkv'],
                           prep['ln_g'], prep['ln_b'])

    qkv4 = qkv2d.reshape(b, n_chunks, r_sz, 3 * e)     # free reshape
    x4 = x_pad.reshape(b, n_chunks, r_sz, e)           # free reshape
    bias3 = _make_attn_bias(n_chunks, maxlen, stride, ttot)

    out4 = _pallas_attn_proj(qkv4, bias3, x4, prep['wp_t'], prep['bp'],
                             nhead=nhead)
    out = out4.reshape(b, tp, e)
    if tp != ttot:
        out = out[:, :ttot]
    return out


# --------------------- pure-JAX faithful reference path --------------------- #
def _ref_strided_preproc(x, name, *, stride, maxlen, h, q_t=None, q_pad=None):
    b, ts, e = x.shape
    t0 = ts // stride
    x = x.reshape(b, 1, t0, stride * e)
    if name == 'Q':
        q_pad = _required_padding(x.shape[2], maxlen)
    original_t = x.shape[2]
    if q_pad:
        x = jnp.pad(x, ((0, 0), (0, 0), (0, q_pad), (0, 0)),
                    constant_values=SENTINEL)
    if name == 'Q':
        q_t = x.shape[2]
    else:
        required_len = q_t + maxlen
        if x.shape[2] < required_len:
            x = jnp.pad(x, ((0, 0), (0, 0), (required_len - x.shape[2], 0), (0, 0)),
                        constant_values=SENTINEL)
        back = x[:, :, -q_t - maxlen:-maxlen]
        front = x[:, :, -q_t:]
        x = jnp.concatenate([back, front], axis=1)
    b_, p_, t_, _ = x.shape
    qd = e // h
    x = x.reshape(b_, p_, t_ // maxlen, maxlen, stride, h, qd)
    x = x.transpose(0, 2, 5, 4, 1, 3, 6)   # bptmshq -> bthspmq
    x = x.reshape(b_ * (t_ // maxlen) * h * stride, p_ * maxlen, qd)
    if name == 'Q':
        return x, original_t, q_t, q_pad
    return x


def _ref_attention(q_p, k_p, v_p, maxlen):
    _, t, e = q_p.shape
    tt = k_p.shape[1]
    row = jnp.arange(t)[:, None]
    col = jnp.arange(tt)[None, :]
    allowed = col <= row + (tt - t)
    if maxlen is not None and maxlen < tt:
        allowed = allowed & (col >= row + (tt - t) - maxlen + 1)
    bias = jnp.where(allowed, 0.0, -1.0e9).astype(jnp.float32)
    invalid = (jnp.sum((k_p == SENTINEL).astype(jnp.int32), -1) == e)
    logits = jnp.einsum('bte,bpe->btp', q_p, k_p) / math.sqrt(e) + bias[None]
    logits = logits - 1.0e9 * invalid[:, None, :].astype(jnp.float32)
    w = jax.nn.softmax(logits, axis=2)
    return jnp.einsum('btp,bpe->bte', w, v_p)


def reference_forward(x_bte, params, *, nhead, stride, maxlen):
    """Faithful pure-JAX port of SelfAttentionLayer.stateless_forward."""
    b, ttot, e = x_bte.shape
    x2d = x_bte.reshape(b * ttot, e)
    mu = jnp.mean(x2d, -1, keepdims=True)
    var = jnp.mean((x2d - mu) ** 2, -1, keepdims=True)
    xn = (x2d - mu) / jnp.sqrt(var + 1e-5)
    xn = xn * params['ln_g'] + params['ln_b']
    q = (xn @ params['wq'].T + params['bq']).reshape(b, ttot, e)
    k = (xn @ params['wk'].T).reshape(b, ttot, e)
    v = (xn @ params['wv'].T).reshape(b, ttot, e)

    pad = _required_padding(ttot, stride)
    if pad:
        cfg = ((0, 0), (0, pad), (0, 0))
        q = jnp.pad(q, cfg, constant_values=SENTINEL)
        k = jnp.pad(k, cfg, constant_values=SENTINEL)
        v = jnp.pad(v, cfg, constant_values=SENTINEL)
    q_p, original_t, q_t, q_pad = _ref_strided_preproc(
        q, 'Q', stride=stride, maxlen=maxlen, h=nhead)
    k_p = _ref_strided_preproc(k, 'K', stride=stride, maxlen=maxlen, h=nhead,
                               q_t=q_t, q_pad=q_pad)
    v_p = _ref_strided_preproc(v, 'V', stride=stride, maxlen=maxlen, h=nhead,
                               q_t=q_t, q_pad=q_pad)
    a = _ref_attention(q_p, k_p, v_p, maxlen)

    t_chunks = q_t // maxlen
    qd = e // nhead
    a = a.reshape(b, t_chunks, nhead, stride, 1, maxlen, qd)
    a = a.transpose(0, 4, 1, 5, 3, 2, 6)              # bthspmq -> bptmshq
    a = a.reshape(b, 1, t_chunks * maxlen, stride * e)
    a = a[:, :, :original_t]
    a = a.reshape(b, original_t * stride, e)
    if pad:
        a = a[:, :-pad]
    a2d = a.reshape(b * ttot, e)
    out2d = x2d + a2d @ params['wp'].T + params['bp']
    return out2d.reshape(b, ttot, e)


# ----------------------------------- main ------------------------------------ #
if __name__ == "__main__":
    B, TTOT, E = 2, 16, 32            # X_bte
    NHEAD, STRIDE, MAXLEN = 2, 2, 4   # StridedAttn(nhead, stride, maxlen, mask=True)
    SCALE = 1.0
    s = math.sqrt(SCALE)

    key = jax.random.PRNGKey(0)
    kx, kq, kk, kv, kp = jax.random.split(key, 5)
    x_bte = jax.random.normal(kx, (B, TTOT, E), jnp.float32)

    def normed_linear_w(k, out_dim, in_dim, scale):
        # NormedLinear init: rows normalized so L2 norm == scale, bias zeroed.
        w = jax.random.normal(k, (out_dim, in_dim), jnp.float32)
        return w * (scale / jnp.linalg.norm(w, axis=1, keepdims=True))

    params = dict(
        ln_g=jnp.ones((E,), jnp.float32),
        ln_b=jnp.zeros((E,), jnp.float32),
        wq=normed_linear_w(kq, E, E, 0.1),        # Q_SCALE
        bq=jnp.zeros((E,), jnp.float32),
        wk=normed_linear_w(kk, E, E, 0.2),        # K_SCALE (bias=False)
        wv=normed_linear_w(kv, E, E, 1.0 * s),    # V_SCALE * sqrt(scale)
        wp=normed_linear_w(kp, E, E, 1.0 * s),    # PROJ_SCALE * sqrt(scale)
        bp=jnp.zeros((E,), jnp.float32),
    )

    prep = prepare_params(params)                 # one-time weight prep (hoisted)
    fwd = jax.jit(functools.partial(pallas_forward, nhead=NHEAD,
                                    stride=STRIDE, maxlen=MAXLEN))
    out = jax.block_until_ready(fwd(x_bte, prep))

    ref = reference_forward(x_bte, params, nhead=NHEAD, stride=STRIDE,
                            maxlen=MAXLEN)

    assert out.shape == (B, TTOT, E)
    assert bool(jnp.all(jnp.isfinite(out)))
    # bf16 MXU operands with f32 accumulation vs. an all-f32 reference:
    # bf16-appropriate tolerance.
    max_err = float(jnp.max(jnp.abs(out - ref)))
    assert bool(jnp.allclose(out, ref, atol=2e-2, rtol=2e-2)), max_err
    print("KERNEL_OK")
</pallas_src>

<mosaic_0001>
module attributes {stable_mosaic.version = 11 : i64} {
  func.func @_ln_qkv_kernel(%arg0: i32, %arg1: i32, %arg2: memref<32x32xf32, #tpu.memory_space<vmem>>, %arg3: memref<1x32xf32, #tpu.memory_space<vmem>>, %arg4: memref<1x32xf32, #tpu.memory_space<vmem>>, %arg5: memref<32x96xbf16, #tpu.memory_space<vmem>>, %arg6: memref<1x96xf32, #tpu.memory_space<vmem>>, %arg7: memref<32x96xbf16, #tpu.memory_space<vmem>>) attributes {dimension_semantics = [#tpu.dimension_semantics<parallel>, #tpu.dimension_semantics<parallel>], iteration_bounds = array<i64: 1, 1>, scalar_prefetch = 0 : i64, scratch_operands = 0 : i64, tpu.core_type = #tpu.core_type<tc>, window_params = [{transform_indices = @transform_0, window_bounds = array<i64: 32, 32>}, {pipeline_mode = #tpu.pipeline_mode<synchronous>, transform_indices = @transform_1, window_bounds = array<i64: 1, 32>}, {pipeline_mode = #tpu.pipeline_mode<synchronous>, transform_indices = @transform_2, window_bounds = array<i64: 1, 32>}, {transform_indices = @transform_3, window_bounds = array<i64: 32, 96>}, {transform_indices = @transform_4, window_bounds = array<i64: 1, 96>}, {transform_indices = @transform_5, window_bounds = array<i64: 32, 96>}]} {
    %c0 = arith.constant 0 : index
    %c0_0 = arith.constant 0 : index
    %0 = vector.load %arg2[%c0, %c0_0] : memref<32x32xf32, #tpu.memory_space<vmem>>, vector<32x32xf32>
    %cst = arith.constant dense<0.000000e+00> : vector<32xf32>
    %1 = vector.multi_reduction <add>, %0, %cst [1] : vector<32x32xf32> to vector<32xf32>
    %2 = vector.shape_cast %1 : vector<32xf32> to vector<32x1xf32>
    %cst_1 = arith.constant 3.200000e+01 : f32
    %3 = vector.broadcast %cst_1 : f32 to vector<32x1xf32>
    %4 = arith.divf %2, %3 : vector<32x1xf32>
    %5 = vector.broadcast %4 : vector<32x1xf32> to vector<32x32xf32>
    %6 = arith.subf %0, %5 : vector<32x32xf32>
    %7 = arith.mulf %6, %6 : vector<32x32xf32>
    %cst_2 = arith.constant dense<0.000000e+00> : vector<32xf32>
    %8 = vector.multi_reduction <add>, %7, %cst_2 [1] : vector<32x32xf32> to vector<32xf32>
    %9 = vector.shape_cast %8 : vector<32xf32> to vector<32x1xf32>
    %cst_3 = arith.constant 3.200000e+01 : f32
    %10 = vector.broadcast %cst_3 : f32 to vector<32x1xf32>
    %11 = arith.divf %9, %10 : vector<32x1xf32>
    %12 = vector.broadcast %4 : vector<32x1xf32> to vector<32x32xf32>
    %13 = arith.subf %0, %12 : vector<32x32xf32>
    %cst_4 = arith.constant 9.99999974E-6 : f32
    %14 = vector.broadcast %cst_4 : f32 to vector<32x1xf32>
    %15 = arith.addf %11, %14 : vector<32x1xf32>
    %16 = math.rsqrt %15 : vector<32x1xf32>
    %17 = vector.broadcast %16 : vector<32x1xf32> to vector<32x32xf32>
    %18 = arith.mulf %13, %17 : vector<32x32xf32>
    %c0_5 = arith.constant 0 : index
    %c0_6 = arith.constant 0 : index
    %19 = vector.load %arg3[%c0_5, %c0_6] : memref<1x32xf32, #tpu.memory_space<vmem>>, vector<1x32xf32>
    %20 = vector.broadcast %19 : vector<1x32xf32> to vector<32x32xf32>
    %21 = arith.mulf %18, %20 : vector<32x32xf32>
    %c0_7 = arith.constant 0 : index
    %c0_8 = arith.constant 0 : index
    %22 = vector.load %arg4[%c0_7, %c0_8] : memref<1x32xf32, #tpu.memory_space<vmem>>, vector<1x32xf32>
    %23 = vector.broadcast %22 : vector<1x32xf32> to vector<32x32xf32>
    %24 = arith.addf %21, %23 : vector<32x32xf32>
    %25 = arith.truncf %24 : vector<32x32xf32> to vector<32x32xbf16>
    %c0_9 = arith.constant 0 : index
    %c0_10 = arith.constant 0 : index
    %26 = vector.load %arg5[%c0_9, %c0_10] : memref<32x96xbf16, #tpu.memory_space<vmem>>, vector<32x96xbf16>
    %cst_11 = arith.constant dense<0.000000e+00> : vector<32x96xf32>
    %27 = tpu.matmul %25, %26, %cst_11 {dimension_numbers = #tpu.dot_dimension_numbers<[1], [0], [0], [1], [0, 0, 1, 1], [], []>} : vector<32x32xbf16>, vector<32x96xbf16>, vector<32x96xf32> -> vector<32x96xf32>
    %c0_12 = arith.constant 0 : index
    %c0_13 = arith.constant 0 : index
    %28 = vector.load %arg6[%c0_12, %c0_13] : memref<1x96xf32, #tpu.memory_space<vmem>>, vector<1x96xf32>
    %29 = vector.broadcast %28 : vector<1x96xf32> to vector<32x96xf32>
    %30 = arith.addf %27, %29 : vector<32x96xf32>
    %31 = arith.truncf %30 : vector<32x96xf32> to vector<32x96xbf16>
    %c0_14 = arith.constant 0 : index
    %c0_15 = arith.constant 0 : index
    %32 = vector.load %arg7[%c0_14, %c0_15] : memref<32x96xbf16, #tpu.memory_space<vmem>>, vector<32x96xbf16>
    tpu.vector_store %arg7[%c0_14, %c0_15], %31 {strides = array<i32>} : memref<32x96xbf16, #tpu.memory_space<vmem>>, vector<32x96xbf16>,
    return
  }
  func.func @transform_0(%arg0: i32, %arg1: i32) -> (i32, i32) {
    %c0_i32 = arith.constant 0 : i32
    %c0_i32_0 = arith.constant 0 : i32
    return %arg1, %c0_i32 : i32, i32
  }
  func.func @transform_1(%arg0: i32, %arg1: i32) -> (i32, i32) {
    %c0_i32 = arith.constant 0 : i32
    %c0_i32_0 = arith.constant 0 : i32
    %c0_i32_1 = arith.constant 0 : i32
    return %c0_i32, %c0_i32_0 : i32, i32
  }
  func.func @transform_2(%arg0: i32, %arg1: i32) -> (i32, i32) {
    %c0_i32 = arith.constant 0 : i32
    %c0_i32_0 = arith.constant 0 : i32
    %c0_i32_1 = arith.constant 0 : i32
    return %c0_i32, %c0_i32_0 : i32, i32
  }
  func.func @transform_3(%arg0: i32, %arg1: i32) -> (i32, i32) {
    %c0_i32 = arith.constant 0 : i32
    %c0_i32_0 = arith.constant 0 : i32
    return %c0_i32, %arg0 : i32, i32
  }
  func.func @transform_4(%arg0: i32, %arg1: i32) -> (i32, i32) {
    %c0_i32 = arith.constant 0 : i32
    %c0_i32_0 = arith.constant 0 : i32
    return %c0_i32, %arg0 : i32, i32
  }
  func.func @transform_5(%arg0: i32, %arg1: i32) -> (i32, i32) {
    %c0_i32 = arith.constant 0 : i32
    return %arg1, %arg0 : i32, i32
  }
}

module attributes {stable_mosaic.version = 11 : i64} {
  func.func @_attn_proj_kernel(%arg0: i32, %arg1: i32, %arg2: memref<1x1x8x96xbf16, #tpu.memory_space<vmem>>, %arg3: memref<1x8x16xf32, #tpu.memory_space<vmem>>, %arg4: memref<1x1x8x32xf32, #tpu.memory_space<vmem>>, %arg5: memref<32x32xbf16, #tpu.memory_space<vmem>>, %arg6: memref<1x32xf32, #tpu.memory_space<vmem>>, %arg7: memref<1x1x8x32xf32, #tpu.memory_space<vmem>>, %arg8: memref<8x64xbf16, #tpu.memory_space<vmem>>) attributes {dimension_semantics = [#tpu.dimension_semantics<parallel>, #tpu.dimension_semantics<arbitrary>], iteration_bounds = array<i64: 2, 2>, scalar_prefetch = 0 : i64, scratch_operands = 1 : i64, tpu.core_type = #tpu.core_type<tc>, window_params = [{transform_indices = @transform_0, window_bounds = array<i64: 1, 1, 8, 96>}, {transform_indices = @transform_1, window_bounds = array<i64: 1, 8, 16>}, {transform_indices = @transform_2, window_bounds = array<i64: 1, 1, 8, 32>}, {pipeline_mode = #tpu.pipeline_mode<synchronous>, transform_indices = @transform_3, window_bounds = array<i64: 32, 32>}, {pipeline_mode = #tpu.pipeline_mode<synchronous>, transform_indices = @transform_4, window_bounds = array<i64: 1, 32>}, {transform_indices = @transform_5, window_bounds = array<i64: 1, 1, 8, 32>}]} {
    %c0_i32 = arith.constant 0 : i32
    %0 = arith.cmpi eq, %arg1, %c0_i32 : i32
    %1 = arith.extui %0 : i1 to i32
    %c0_i32_0 = arith.constant 0 : i32
    %2 = arith.cmpi ne, %1, %c0_i32_0 : i32
    scf.if %2 {
      %cst_35 = arith.constant 0.000000e+00 : bf16
      %66 = vector.broadcast %cst_35 : bf16 to vector<8x64xbf16>
      %c0_36 = arith.constant 0 : index
      %c0_37 = arith.constant 0 : index
      %67 = vector.load %arg8[%c0_36, %c0_37] : memref<8x64xbf16, #tpu.memory_space<vmem>>, vector<8x64xbf16>
      tpu.vector_store %arg8[%c0_36, %c0_37], %66 {strides = array<i32>} : memref<8x64xbf16, #tpu.memory_space<vmem>>, vector<8x64xbf16>,
    } else {
    }
    %c0 = arith.constant 0 : index
    %c0_1 = arith.constant 0 : index
    %c0_2 = arith.constant 0 : index
    %c0_3 = arith.constant 0 : index
    %3 = vector.load %arg2[%c0, %c0_1, %c0_2, %c0_3] : memref<1x1x8x96xbf16, #tpu.memory_space<vmem>>, vector<1x1x8x96xbf16>
    %4 = vector.shape_cast %3 : vector<1x1x8x96xbf16> to vector<8x96xbf16>
    %c0_4 = arith.constant 0 : index
    %c0_5 = arith.constant 0 : index
    %5 = vector.load %arg8[%c0_4, %c0_5] : memref<8x64xbf16, #tpu.memory_space<vmem>>, vector<8x64xbf16>
    %6 = vector.extract_strided_slice %4 {offsets = [0, 32], sizes = [8, 64], strides = [1, 1]} : vector<8x96xbf16> to vector<8x64xbf16>
    %7 = tpu.concatenate %5, %6 in 0 : vector<8x64xbf16>, vector<8x64xbf16> -> vector<16x64xbf16>
    %c0_6 = arith.constant 0 : index
    %c0_7 = arith.constant 0 : index
    %c0_8 = arith.constant 0 : index
    %8 = vector.load %arg3[%c0_6, %c0_7, %c0_8] : memref<1x8x16xf32, #tpu.memory_space<vmem>>, vector<1x8x16xf32>
    %9 = vector.shape_cast %8 : vector<1x8x16xf32> to vector<8x16xf32>
    %c0_9 = arith.constant 0 : index
    %c0_10 = arith.constant 0 : index
    %c0_11 = arith.constant 0 : index
    %c0_12 = arith.constant 0 : index
    %10 = vector.load %arg4[%c0_9, %c0_10, %c0_11, %c0_12] : memref<1x1x8x32xf32, #tpu.memory_space<vmem>>, vector<1x1x8x32xf32>
    %11 = vector.shape_cast %10 : vector<1x1x8x32xf32> to vector<8x32xf32>
    %c0_13 = arith.constant 0 : index
    %c0_14 = arith.constant 0 : index
    %12 = vector.load %arg6[%c0_13, %c0_14] : memref<1x32xf32, #tpu.memory_space<vmem>>, vector<1x32xf32>
    %13 = vector.broadcast %12 : vector<1x32xf32> to vector<8x32xf32>
    %14 = arith.addf %11, %13 : vector<8x32xf32>
    %15 = vector.extract_strided_slice %4 {offsets = [0, 0], sizes = [8, 16], strides = [1, 1]} : vector<8x96xbf16> to vector<8x16xbf16>
    %16 = vector.extract_strided_slice %7 {offsets = [0, 0], sizes = [16, 16], strides = [1, 1]} : vector<16x64xbf16> to vector<16x16xbf16>
    %17 = vector.extract_strided_slice %7 {offsets = [0, 32], sizes = [16, 16], strides = [1, 1]} : vector<16x64xbf16> to vector<16x16xbf16>
    %cst = arith.constant dense<0.000000e+00> : vector<8x16xf32>
    %18 = tpu.matmul %15, %16, %cst {dimension_numbers = #tpu.dot_dimension_numbers<[1], [1], [0], [0], [0, 0, 1, 0], [], []>} : vector<8x16xbf16>, vector<16x16xbf16>, vector<8x16xf32> -> vector<8x16xf32>
    %cst_15 = arith.constant 2.500000e-01 : f32
    %19 = vector.broadcast %cst_15 : f32 to vector<8x16xf32>
    %20 = arith.mulf %18, %19 : vector<8x16xf32>
    %21 = arith.addf %20, %9 : vector<8x16xf32>
    %cst_16 = arith.constant dense<0xFF800000> : vector<8xf32>
    %22 = vector.multi_reduction <maximumf>, %21, %cst_16 [1] : vector<8x16xf32> to vector<8xf32>
    %23 = vector.shape_cast %22 : vector<8xf32> to vector<8x1xf32>
    %24 = vector.broadcast %23 : vector<8x1xf32> to vector<8x16xf32>
    %25 = arith.subf %21, %24 : vector<8x16xf32>
    %26 = math.exp %25 : vector<8x16xf32>
    %cst_17 = arith.constant dense<0.000000e+00> : vector<8xf32>
    %27 = vector.multi_reduction <add>, %26, %cst_17 [1] : vector<8x16xf32> to vector<8xf32>
    %28 = vector.shape_cast %27 : vector<8xf32> to vector<8x1xf32>
    %29 = tpu.reciprocal %28 {approx = true} : vector<8x1xf32> -> vector<8x1xf32>
    %30 = arith.truncf %26 : vector<8x16xf32> to vector<8x16xbf16>
    %cst_18 = arith.constant dense<0.000000e+00> : vector<8x16xf32>
    %31 = tpu.matmul %30, %17, %cst_18 {dimension_numbers = #tpu.dot_dimension_numbers<[1], [0], [0], [1], [0, 0, 1, 1], [], []>} : vector<8x16xbf16>, vector<16x16xbf16>, vector<8x16xf32> -> vector<8x16xf32>
    %32 = vector.broadcast %29 : vector<8x1xf32> to vector<8x16xf32>
    %33 = arith.mulf %31, %32 : vector<8x16xf32>
    %34 = arith.truncf %33 : vector<8x16xf32> to vector<8x16xbf16>
    %c0_19 = arith.constant 0 : index
    %c0_20 = arith.constant 0 : index
    %35 = vector.load %arg5[%c0_19, %c0_20] : memref<32x32xbf16, #tpu.memory_space<vmem>>, vector<16x32xbf16>
    %cst_21 = arith.constant dense<0.000000e+00> : vector<8x32xf32>
    %36 = tpu.matmul %34, %35, %cst_21 {dimension_numbers = #tpu.dot_dimension_numbers<[1], [0], [0], [1], [0, 0, 1, 1], [], []>} : vector<8x16xbf16>, vector<16x32xbf16>, vector<8x32xf32> -> vector<8x32xf32>
    %37 = arith.addf %14, %36 : vector<8x32xf32>
    %38 = vector.extract_strided_slice %4 {offsets = [0, 16], sizes = [8, 16], strides = [1, 1]} : vector<8x96xbf16> to vector<8x16xbf16>
    %39 = vector.extract_strided_slice %7 {offsets = [0, 16], sizes = [16, 16], strides = [1, 1]} : vector<16x64xbf16> to vector<16x16xbf16>
    %40 = vector.extract_strided_slice %7 {offsets = [0, 48], sizes = [16, 16], strides = [1, 1]} : vector<16x64xbf16> to vector<16x16xbf16>
    %cst_22 = arith.constant dense<0.000000e+00> : vector<8x16xf32>
    %41 = tpu.matmul %38, %39, %cst_22 {dimension_numbers = #tpu.dot_dimension_numbers<[1], [1], [0], [0], [0, 0, 1, 0], [], []>} : vector<8x16xbf16>, vector<16x16xbf16>, vector<8x16xf32> -> vector<8x16xf32>
    %cst_23 = arith.constant 2.500000e-01 : f32
    %42 = vector.broadcast %cst_23 : f32 to vector<8x16xf32>
    %43 = arith.mulf %41, %42 : vector<8x16xf32>
    %44 = arith.addf %43, %9 : vector<8x16xf32>
    %cst_24 = arith.constant dense<0xFF800000> : vector<8xf32>
    %45 = vector.multi_reduction <maximumf>, %44, %cst_24 [1] : vector<8x16xf32> to vector<8xf32>
    %46 = vector.shape_cast %45 : vector<8xf32> to vector<8x1xf32>
    %47 = vector.broadcast %46 : vector<8x1xf32> to vector<8x16xf32>
    %48 = arith.subf %44, %47 : vector<8x16xf32>
    %49 = math.exp %48 : vector<8x16xf32>
    %cst_25 = arith.constant dense<0.000000e+00> : vector<8xf32>
    %50 = vector.multi_reduction <add>, %49, %cst_25 [1] : vector<8x16xf32> to vector<8xf32>
    %51 = vector.shape_cast %50 : vector<8xf32> to vector<8x1xf32>
    %52 = tpu.reciprocal %51 {approx = true} : vector<8x1xf32> -> vector<8x1xf32>
    %53 = arith.truncf %49 : vector<8x16xf32> to vector<8x16xbf16>
    %cst_26 = arith.constant dense<0.000000e+00> : vector<8x16xf32>
    %54 = tpu.matmul %53, %40, %cst_26 {dimension_numbers = #tpu.dot_dimension_numbers<[1], [0], [0], [1], [0, 0, 1, 1], [], []>} : vector<8x16xbf16>, vector<16x16xbf16>, vector<8x16xf32> -> vector<8x16xf32>
    %55 = vector.broadcast %52 : vector<8x1xf32> to vector<8x16xf32>
    %56 = arith.mulf %54, %55 : vector<8x16xf32>
    %57 = arith.truncf %56 : vector<8x16xf32> to vector<8x16xbf16>
    %c16 = arith.constant 16 : index
    %c0_27 = arith.constant 0 : index
    %58 = vector.load %arg5[%c16, %c0_27] : memref<32x32xbf16, #tpu.memory_space<vmem>>, vector<16x32xbf16>
    %cst_28 = arith.constant dense<0.000000e+00> : vector<8x32xf32>
    %59 = tpu.matmul %57, %58, %cst_28 {dimension_numbers = #tpu.dot_dimension_numbers<[1], [0], [0], [1], [0, 0, 1, 1], [], []>} : vector<8x16xbf16>, vector<16x32xbf16>, vector<8x32xf32> -> vector<8x32xf32>
    %60 = arith.addf %37, %59 : vector<8x32xf32>
    %c0_29 = arith.constant 0 : index
    %c0_30 = arith.constant 0 : index
    %c0_31 = arith.constant 0 : index
    %c0_32 = arith.constant 0 : index
    %61 = vector.load %arg7[%c0_29, %c0_30, %c0_31, %c0_32] : memref<1x1x8x32xf32, #tpu.memory_space<vmem>>, vector<1x1x8x32xf32>
    %62 = vector.shape_cast %61 : vector<1x1x8x32xf32> to vector<8x32xf32>
    %63 = vector.shape_cast %60 : vector<8x32xf32> to vector<1x1x8x32xf32>
    tpu.vector_store %arg7[%c0_29, %c0_30, %c0_31, %c0_32], %63 {strides = array<i32>} : memref<1x1x8x32xf32, #tpu.memory_space<vmem>>, vector<1x1x8x32xf32>,
    %64 = vector.extract_strided_slice %4 {offsets = [0, 32], sizes = [8, 64], strides = [1, 1]} : vector<8x96xbf16> to vector<8x64xbf16>
    %c0_33 = arith.constant 0 : index
    %c0_34 = arith.constant 0 : index
    %65 = vector.load %arg8[%c0_33, %c0_34] : memref<8x64xbf16, #tpu.memory_space<vmem>>, vector<8x64xbf16>
    tpu.vector_store %arg8[%c0_33, %c0_34], %64 {strides = array<i32>} : memref<8x64xbf16, #tpu.memory_space<vmem>>, vector<8x64xbf16>,
    return
  }
  func.func @transform_0(%arg0: i32, %arg1: i32) -> (i32, i32, i32, i32) {
    %c0_i32 = arith.constant 0 : i32
    %c0_i32_0 = arith.constant 0 : i32
    %c0_i32_1 = arith.constant 0 : i32
    return %arg0, %arg1, %c0_i32, %c0_i32_0 : i32, i32, i32, i32
  }
  func.func @transform_1(%arg0: i32, %arg1: i32) -> (i32, i32, i32) {
    %c0_i32 = arith.constant 0 : i32
    %0 = arith.cmpi eq, %arg1, %c0_i32 : i32
    %c1_i32 = arith.constant 1 : i32
    %1 = arith.cmpi eq, %arg1, %c1_i32 : i32
    %c2_i32 = arith.constant 2 : i32
    %c1_i32_0 = arith.constant 1 : i32
    %2 = arith.select %1, %c2_i32, %c1_i32_0 : i32
    %c0_i32_1 = arith.constant 0 : i32
    %3 = arith.select %0, %c0_i32_1, %2 : i32
    %c0_i32_2 = arith.constant 0 : i32
    %c0_i32_3 = arith.constant 0 : i32
    %c0_i32_4 = arith.constant 0 : i32
    return %3, %c0_i32_2, %c0_i32_3 : i32, i32, i32
  }
  func.func @transform_2(%arg0: i32, %arg1: i32) -> (i32, i32, i32, i32) {
    %c0_i32 = arith.constant 0 : i32
    %c0_i32_0 = arith.constant 0 : i32
    %c0_i32_1 = arith.constant 0 : i32
    return %arg0, %arg1, %c0_i32, %c0_i32_0 : i32, i32, i32, i32
  }
  func.func @transform_3(%arg0: i32, %arg1: i32) -> (i32, i32) {
    %c0_i32 = arith.constant 0 : i32
    %c0_i32_0 = arith.constant 0 : i32
    %c0_i32_1 = arith.constant 0 : i32
    return %c0_i32, %c0_i32_0 : i32, i32
  }
  func.func @transform_4(%arg0: i32, %arg1: i32) -> (i32, i32) {
    %c0_i32 = arith.constant 0 : i32
    %c0_i32_0 = arith.constant 0 : i32
    %c0_i32_1 = arith.constant 0 : i32
    return %c0_i32, %c0_i32_0 : i32, i32
  }
  func.func @transform_5(%arg0: i32, %arg1: i32) -> (i32, i32, i32, i32) {
    %c0_i32 = arith.constant 0 : i32
    %c0_i32_0 = arith.constant 0 : i32
    %c0_i32_1 = arith.constant 0 : i32
    return %arg0, %arg1, %c0_i32, %c0_i32_0 : i32, i32, i32, i32
  }
}

</mosaic_0001>

<llo_original>
// kernel: pallas_forward.2
$region0: #{pallas_forward.2}
  #allocation0 [shape = 'u32[]', space=smem, size = 0x4, offset = 0x4, fixed_abs, tag = 'smem constant byte address 0x4 - core index']
  #allocation1 [shape = 'u32[144,128]{1,0:T(1,128)}', space=vmem, size = 0x12000, scoped, tag = 'internal scratch']
  %s0 = inlined_call_operand.hbm [shape: f32[32,32], index: 0, kind: input, shape index: {}]
  %s1 = inlined_call_operand.vmem [shape: f32[1,32], index: 1, kind: input, shape index: {}]
  %s2 = inlined_call_operand.vmem [shape: f32[1,32], index: 2, kind: input, shape index: {}]
  %s3 = inlined_call_operand.vmem [shape: bf16[32,96], index: 3, kind: input, shape index: {}]
  %s4 = inlined_call_operand.vmem [shape: f32[1,96], index: 4, kind: input, shape index: {}]
  %s5 = inlined_call_operand.vmem [shape: bf16[32,96], index: 5, kind: output, shape index: {}]
  %s6 = sld [smem:[#allocation0]]
  $region34: #{pallas_forward.2} parent=0
    _
  %s8 = ssub.s32 1, %s6
  %s9 = scalar_select 0, %s8, %s6
  $region1: #{pallas_forward.2} parent=0
    #allocation2 [shape = 'u8[16384]{0}', space=vmem, size = 0x4000, scoped, tag = 'input window, operand 0, single buffered']
    #allocation3 [shape = 's32[1]{0}', space=sflag, size = 0x4, scoped, tag = 'scoped memory for pallas_forward.2']
    %10 = vsyncpa [#allocation3], 0
    // Predicated region
    $region2: #{pallas_forward.2} parent=1 // pred_check
      _
    $region3: #{pallas_forward.2} parent=1 // pred_check_branch
      %12 = sbr.rel (0) target = $region5
    $region4: #{pallas_forward.2} parent=1 // pred_region
      %s14 = ssub.s32 512, 512
      %15 = vsyncadd [#allocation3], %s14
      %s16 = sshll.u32 [#allocation2], 4
      %s17 = int_to_ptr.vmem [resolvable:$true] %s16
      %22 = dma.hbm_to_vmem [thread:$0]  %s0, 512, %s17, [#allocation3], 128, 128, 8
    $region5: #{pallas_forward.2} parent=1 // pred_fallthru
      _
    // Predicated region
    $region6: #{pallas_forward.2} parent=1 // pred_check
      _
    $region7: #{pallas_forward.2} parent=1 // pred_check_branch
      %24 = sbr.rel (0) target = $region9
    $region8: #{pallas_forward.2} parent=1 // pred_region
      _
    $region9: #{pallas_forward.2} parent=1 // pred_fallthru
      _
    // Predicated region
    $region10: #{pallas_forward.2} parent=1 // pred_check
      _
    $region11: #{pallas_forward.2} parent=1 // pred_check_branch
      %26 = sbr.rel (0) target = $region13
    $region12: #{pallas_forward.2} parent=1 // pred_region
      _
    $region13: #{pallas_forward.2} parent=1 // pred_fallthru
      _
    // Predicated region
    $region14: #{pallas_forward.2} parent=1 // pred_check
      _
    $region15: #{pallas_forward.2} parent=1 // pred_check_branch
      %28 = sbr.rel (0) target = $region17
    $region16: #{pallas_forward.2} parent=1 // pred_region
      _
    $region17: #{pallas_forward.2} parent=1 // pred_fallthru
      _
    // Predicated region
    $region18: #{pallas_forward.2} parent=1 // pred_check
      _
    $region19: #{pallas_forward.2} parent=1 // pred_check_branch
      %30 = sbr.rel (0) target = $region21
    $region20: #{pallas_forward.2} parent=1 // pred_region
      _
    $region21: #{pallas_forward.2} parent=1 // pred_fallthru
      _
    // Predicated region
    $region22: #{pallas_forward.2} parent=1 // pred_check
      _
    $region23: #{pallas_forward.2} parent=1 // pred_check_branch
      %32 = sbr.rel (0) target = $region25
    $region24: #{pallas_forward.2} parent=1 // pred_region
      %33 = dma.done [#allocation3], 512
    $region25: #{pallas_forward.2} parent=1 // pred_fallthru
      _
    %v35 = vld [vmem:[#allocation2] sm:$0xff]
    %v36 = vld [vmem:[#allocation2 + $0x8] sm:$0xff]
    %v37 = vld [vmem:[#allocation2 + $0x10] sm:$0xff]
    %v38 = vld [vmem:[#allocation2 + $0x18] sm:$0xff]
    %vm39 = vcmask 261120
    %v40 = vsel %vm39, %v35, 0.0
    %41 = vadd.xlane.f32.xlu0 %v40
    %v42 = vpop.xlane.xlu0 %41
    %v43 = vsel %vm39, %v36, 0.0
    %44 = vadd.xlane.f32.xlu0 %v43
    %v45 = vpop.xlane.xlu0 %44
    %v46 = vsel %vm39, %v37, 0.0
    %47 = vadd.xlane.f32.xlu0 %v46
    %v48 = vpop.xlane.xlu0 %47
    %v49 = vsel %vm39, %v38, 0.0
    %50 = vadd.xlane.f32.xlu0 %v49
    %v51 = vpop.xlane.xlu0 %50
    %v52 = vrcp.pop 32.0
    %v53 = vmul.f32 %v42, %v52
    %v54 = vmul.f32 %v45, %v52
    %v55 = vmul.f32 %v48, %v52
    %v56 = vmul.f32 %v51, %v52
    %v57 = vsub.f32 %v35, %v53
    %v58 = vsub.f32 %v36, %v54
    %v59 = vsub.f32 %v37, %v55
    %v60 = vsub.f32 %v38, %v56
    %v61 = vmul.f32 %v57, %v57
    %v62 = vmul.f32 %v58, %v58
    %v63 = vmul.f32 %v59, %v59
    %v64 = vmul.f32 %v60, %v60
    %v65 = vsel %vm39, %v61, 0.0
    %66 = vadd.xlane.f32.xlu0 %v65
    %v67 = vpop.xlane.xlu0 %66
    %v68 = vsel %vm39, %v62, 0.0
    %69 = vadd.xlane.f32.xlu0 %v68
    %v70 = vpop.xlane.xlu0 %69
    %v71 = vsel %vm39, %v63, 0.0
    %72 = vadd.xlane.f32.xlu0 %v71
    %v73 = vpop.xlane.xlu0 %72
    %v74 = vsel %vm39, %v64, 0.0
    %75 = vadd.xlane.f32.xlu0 %v74
    %v76 = vpop.xlane.xlu0 %75
    %v77 = vmul.f32 %v67, %v52
    %v78 = vmul.f32 %v70, %v52
    %v79 = vmul.f32 %v73, %v52
    %v80 = vmul.f32 %v76, %v52
    %v81 = vadd.f32 %v77, 1e-05
    %v82 = vadd.f32 %v78, 1e-05
    %v83 = vadd.f32 %v79, 1e-05
    %v84 = vadd.f32 %v80, 1e-05
    %v85 = vrsqrt.pop %v81
    %v86 = vrsqrt.pop %v82
    %v87 = vrsqrt.pop %v83
    %v88 = vrsqrt.pop %v84
    %v89 = vmul.f32 %v57, %v85
    %v90 = vmul.f32 %v58, %v86
    %v91 = vmul.f32 %v59, %v87
    %v92 = vmul.f32 %v60, %v88
    %v93 = vld [vmem:[%s1] sm:$0x1]
    %v95 = vlaneseq
    %v96 = vshrl.u32 %v95, 7
    %v97 = vsub.s32 0, %v96
    %v98 = vrot.slane %v93, %v97
    %v100 = vmul.f32 %v89, %v98
    %v101 = vmul.f32 %v90, %v98
    %v102 = vmul.f32 %v91, %v98
    %v103 = vmul.f32 %v92, %v98
    %v104 = vld [vmem:[%s2] sm:$0x1]
    %v106 = vlaneseq
    %v107 = vshrl.u32 %v106, 7
    %v108 = vsub.s32 0, %v107
    %v109 = vrot.slane %v104, %v108
    %v111 = vadd.f32 %v100, %v109
    %v112 = vadd.f32 %v101, %v109
    %v113 = vadd.f32 %v102, %v109
    %v114 = vadd.f32 %v103, %v109
    %v115 = vpack.c.bf16 %v112, %v111
    %v116 = vpack.c.bf16 %v114, %v113
    %v117 = vld [vmem:[%s3] sm:$0xf]
    %v118 = vld [vmem:[%s3 + $0x4] sm:$0xf]
    %v119 = vld [vmem:[%s3 + $0x8] sm:$0xf]
    %v120 = vld [vmem:[%s3 + $0xc] sm:$0xf]
    %v121 = vld [vmem:[%s4] sm:$0x1]
    %v123 = vlaneseq
    %v124 = vshrl.u32 %v123, 7
    %v125 = vsub.s32 0, %v124
    %v126 = vrot.slane %v121, %v125
    %v132 = vunpack.c.l.b16 %v117
    %v133 = vunpack.c.l.b16 %v118
    %v134 = vunpack.c.l.b16 %v119
    %v135 = vunpack.c.l.b16 %v120
    %v136 = vpack.c.b16 %v133, %v132
    %v137 = vpack.c.b16 %v135, %v134
    %v141 = vsel %vm39, %v115, 0
    %v144 = vsel %vm39, %v116, 0
    %146 = vmatprep.subr.bf16.mxu0 0
    %147 = vmatpush1.bf16.msra.mxu0 %v136
    %148 = vmatprep.subr.bf16.mxu0 0
    %149 = vmatpush1.bf16.msra.mxu0 %v137
    %150 = vmatprep.subr.bf16.mxu0 0
    %151 = vmatpush1.bf16.msra.mxu0 0
    %152 = vmatprep.subr.bf16.mxu0 0
    %153 = vmatpush1.bf16.msra.mxu0 0
    %154 = vmatprep.subr.bf16.mxu0 0
    %155 = vmatpush1.bf16.msra.mxu0 0
    %156 = vmatprep.subr.bf16.mxu0 0
    %157 = vmatpush1.bf16.msra.mxu0 0
    %158 = vmatprep.subr.bf16.mxu0 0
    %159 = vmatpush1.bf16.msra.mxu0 0
    %160 = vmatprep.subr.bf16.mxu0 0
    %161 = vmatpush1.bf16.msra.mxu0 0
    %162 = vmatprep.subr.bf16.mxu0 0
    %163 = vmatpush1.bf16.msra.mxu0 0
    %164 = vmatprep.subr.bf16.mxu0 0
    %165 = vmatpush1.bf16.msra.mxu0 0
    %166 = vmatprep.subr.bf16.mxu0 0
    %167 = vmatpush1.bf16.msra.mxu0 0
    %168 = vmatprep.subr.bf16.mxu0 0
    %169 = vmatpush1.bf16.msra.mxu0 0
    %170 = vmatprep.subr.bf16.mxu0 0
    %171 = vmatpush1.bf16.msra.mxu0 0
    %172 = vmatprep.subr.bf16.mxu0 0
    %173 = vmatpush1.bf16.msra.mxu0 0
    %174 = vmatprep.subr.bf16.mxu0 0
    %175 = vmatpush1.bf16.msra.mxu0 0
    %176 = vmatprep.subr.bf16.mxu0 0
    %177 = vmatpush1.bf16.msra.mxu0 0
    %178 = vmatprep.mubr.bf16.mxu0 0
    %179 = vmatmul.mubr.bf16.gmra.mrb[0].mxu0 %v141
    %v180 = vpop.f32.mrb[0].mxu0
    %v181 = vadd.f32 %v126, %v180
    %v182 = vpop.f32.mrb[0].mxu0
    %v183 = vpop.f32.mrb[0].mxu0
    %v184 = vadd.f32 %v126, %v183
    %v185 = vpop.f32.mrb[0].mxu0
    %186 = vmatprep.mubr.bf16.mxu0 0
    %187 = vmatmul.mubr.bf16.gmra.mrb[0].mxu0 %v144
    %v188 = vpop.f32.mrb[0].mxu0
    %v189 = vadd.f32 %v126, %v188
    %v190 = vpop.f32.mrb[0].mxu0
    %v191 = vpop.f32.mrb[0].mxu0
    %v192 = vadd.f32 %v126, %v191
    %v193 = vpop.f32.mrb[0].mxu0
    %194 = vdwg.mxu0
    %v195 = vpack.c.bf16 %v184, %v181
    %v196 = vpack.c.bf16 %v192, %v189
    %v199 = vunpack.c.l.b16 %v195
    %v200 = vunpack.c.h.b16 %v195
    %v201 = vunpack.c.l.b16 %v196
    %v202 = vunpack.c.h.b16 %v196
    %v203 = vpack.c.b16 %v199, %v199
    %v204 = vpack.c.b16 %v200, %v200
    %v205 = vpack.c.b16 %v201, %v201
    %v206 = vpack.c.b16 %v202, %v202
    %vm211 = vcmask 781312
    %212 = vst.msk [vmem:[%s5] sm:$0xf] %vm211, %v203
    %213 = vst.msk [vmem:[%s5 + $0x4] sm:$0xf] %vm211, %v204
    %214 = vst.msk [vmem:[%s5 + $0x8] sm:$0xf] %vm211, %v205
    %215 = vst.msk [vmem:[%s5 + $0xc] sm:$0xf] %vm211, %v206
    // Predicated region
    $region26: #{pallas_forward.2} parent=1 // pred_check
      _
    $region27: #{pallas_forward.2} parent=1 // pred_check_branch
      %217 = sbr.rel (0) target = $region29
    $region28: #{pallas_forward.2} parent=1 // pred_region
      _
    $region29: #{pallas_forward.2} parent=1 // pred_fallthru
      _
    // Predicated region
    $region30: #{pallas_forward.2} parent=1 // pred_check
      _
    $region31: #{pallas_forward.2} parent=1 // pred_check_branch
      %219 = sbr.rel (0) target = $region33
    $region32: #{pallas_forward.2} parent=1 // pred_region
      _
    $region33: #{pallas_forward.2} parent=1 // pred_fallthru
      _
    %220 = vsyncpa [#allocation3], 1

// kernel: pallas_forward.3
$region0: #{pallas_forward.3}
  #allocation0 [shape = 'u32[]', space=smem, size = 0x4, offset = 0x4, fixed_abs, tag = 'smem constant byte address 0x4 - core index']
  #allocation1 [shape = 'u32[144,128]{1,0:T(1,128)}', space=vmem, size = 0x12000, scoped, tag = 'internal scratch']
  #allocation2 [shape = 'bf16[8,64]{1,0:T(8,128)(2,1)}', space=vmem, size = 0x800, scoped, tag = 'scratch operand']
  %s0 = inlined_call_operand.vmem [shape: bf16[2,2,8,96], index: 0, kind: input, shape index: {}]
  %s1 = inlined_call_operand.vmem [shape: f32[3,8,16], index: 1, kind: input, shape index: {}]
  %s2 = inlined_call_operand.vmem [shape: f32[2,2,8,32], index: 2, kind: input, shape index: {}]
  %s3 = inlined_call_operand.vmem [shape: bf16[32,32], index: 3, kind: input, shape index: {}]
  %s4 = inlined_call_operand.vmem [shape: f32[1,32], index: 4, kind: input, shape index: {}]
  %s5 = inlined_call_operand.hbm [shape: f32[2,2,8,32], index: 5, kind: output, shape index: {}]
  %s6 = sld [smem:[#allocation0]]
  $region57: #{pallas_forward.3} parent=0
    _
  %s8 = ssub.s32 1, %s6
  %s9 = scalar_select 0, %s8, %s6
  $region1: #{pallas_forward.3} parent=0
    #allocation3 [shape = 'u8[8192]{0}', space=vmem, size = 0x2000, scoped, tag = 'output window, operand 0']
    #allocation4 [shape = 's32[2]{0}', space=sflag, size = 0x8, scoped, tag = 'scoped memory for pallas_forward.3']
    %10 = vsyncpa [#allocation4], 0
    %s11 = scalar_lea.sflag [#allocation4], 1
    %12 = vsyncpa %s11, 0
    loop: start=0, step=1, limit=6
    $region2: #{pallas_forward.3} parent=1 // loop_pre_header
      _
    $region3: #{pallas_forward.3} parent=1 // loop_header
      %s14 = sphi 0, %s18
      %p15 = scmp.ge.s32.totalorder %s14, 6
      %s21 = sphi 0, %s33
      %s22 = sphi 0, %s29
      %s23 = sphi 0, %s21
      %s24 = sphi 0, %s22
      %s25 = sphi 0, %s23
      %s26 = sphi 0, %s24
      %s38 = sphi 0, %s40
      %s41 = sphi 0, %s38
      %s42 = sphi 0, %s41
      %s58 = sphi 0, %s42
      %s72 = sphi 0, %s74
      %s75 = sphi 0, %s72
      %s76 = sphi 0, %s75
      %s92 = sphi 0, %s76
      %s100 = sphi 0, %s102
      %s103 = sphi 0, %s100
      %s104 = sphi 0, %s103
      %s120 = sphi 0, %s104
      %s124 = sphi 0, %s124
      %s126 = sphi 0, %s124
      %s127 = sphi 0, %s126
      %s141 = sphi 0, %s127
      %s145 = sphi 0, %s145
      %s147 = sphi 0, %s145
      %s148 = sphi 0, %s147
      %s162 = sphi 0, %s148
      %s170 = sphi 0, %s172
      %s173 = sphi 0, %s170
      %s174 = sphi 0, %s173
      %s190 = sphi 0, %s174
    $region4: #{pallas_forward.3} parent=1 // loop_header_branch
      %17 = sbr.rel (%p15) target = $region8
    $region5: #{pallas_forward.3} parent=1 // loop_body
      %s19 = ssub.s32 %s14, 1
      %s20 = ssub.s32 %s14, 2
      %s27 = sadd.s32 1, %s22
      %p28 = scmp.ge.s32.totalorder %s27, 2
      %s29 = scalar_select %p28, 0, %s27
      %s30 = sadd.s32 1, %s21
      %s31 = scalar_select %p28, %s30, %s21
      %p32 = scmp.ge.s32.totalorder %s31, 2
      %s33 = scalar_select %p32, 0, %s31
      %s34 = ssub.s32 %s21, %s33
      %s35 = ssub.s32 %s22, %s29
      %s36 = sor.u32 %s34, %s35
      %p37 = scmp.eq.s32.totalorder %s36, 0
      %s39 = sadd.s32 %s38, 1
      %s40 = scalar_select %p37, %s38, %s39
      %p43 = pneg %p37
      %p44 = scmp.eq.s32.totalorder %s14, 3
      %p45 = por %p43, %p44
      %p46 = scmp.ne.s32.totalorder %s38, %s41
      %p47 = scmp.eq.s32.totalorder %s14, 0
      %p48 = por %p46, %p47
      %p49 = scmp.ne.s32.totalorder %s38, %s41
      %p50 = scmp.eq.s32.totalorder %s19, 3
      %p51 = por %p49, %p50
      %p52 = scmp.ne.s32.totalorder %s41, %s42
      %p53 = scmp.eq.s32.totalorder %s19, 0
      %p54 = por %p52, %p53
      %p55 = scmp.ne.s32.totalorder %s41, %s42
      %p56 = scmp.eq.s32.totalorder %s20, 3
      %p57 = por %p55, %p56
      %p59 = scmp.ne.s32.totalorder %s42, %s58
      %p60 = scmp.eq.s32.totalorder %s20, 0
      %p61 = por %p59, %p60
      %p62 = scmp.eq.s32.totalorder %s22, 0
      %p63 = scmp.eq.s32.totalorder %s22, 1
      %s64 = scalar_select %p63, 2, 1
      %s65 = scalar_select %p62, 0, %s64
      %p66 = scmp.eq.s32.totalorder %s29, 0
      %p67 = scmp.eq.s32.totalorder %s29, 1
      %s68 = scalar_select %p67, 2, 1
      %s69 = scalar_select %p66, 0, %s68
      %s70 = ssub.s32 %s65, %s69
      %p71 = scmp.eq.s32.totalorder %s70, 0
      %s73 = sadd.s32 %s72, 1
      %s74 = scalar_select %p71, %s72, %s73
      %p77 = pneg %p71
      %p78 = scmp.eq.s32.totalorder %s14, 3
      %p79 = por %p77, %p78
      %p80 = scmp.ne.s32.totalorder %s72, %s75
      %p81 = scmp.eq.s32.totalorder %s14, 0
      %p82 = por %p80, %p81
      %p83 = scmp.ne.s32.totalorder %s72, %s75
      %p84 = scmp.eq.s32.totalorder %s19, 3
      %p85 = por %p83, %p84
      %p86 = scmp.ne.s32.totalorder %s75, %s76
      %p87 = scmp.eq.s32.totalorder %s19, 0
      %p88 = por %p86, %p87
      %p89 = scmp.ne.s32.totalorder %s75, %s76
      %p90 = scmp.eq.s32.totalorder %s20, 3
      %p91 = por %p89, %p90
      %p93 = scmp.ne.s32.totalorder %s76, %s92
      %p94 = scmp.eq.s32.totalorder %s20, 0
      %p95 = por %p93, %p94
      %s96 = ssub.s32 %s21, %s33
      %s97 = ssub.s32 %s22, %s29
      %s98 = sor.u32 %s96, %s97
      %p99 = scmp.eq.s32.totalorder %s98, 0
      %s101 = sadd.s32 %s100, 1
      %s102 = scalar_select %p99, %s100, %s101
      %p105 = pneg %p99
      %p106 = scmp.eq.s32.totalorder %s14, 3
      %p107 = por %p105, %p106
      %p108 = scmp.ne.s32.totalorder %s100, %s103
      %p109 = scmp.eq.s32.totalorder %s14, 0
      %p110 = por %p108, %p109
      %p111 = scmp.ne.s32.totalorder %s100, %s103
      %p112 = scmp.eq.s32.totalorder %s19, 3
      %p113 = por %p111, %p112
      %p114 = scmp.ne.s32.totalorder %s103, %s104
      %p115 = scmp.eq.s32.totalorder %s19, 0
      %p116 = por %p114, %p115
      %p117 = scmp.ne.s32.totalorder %s103, %s104
      %p118 = scmp.eq.s32.totalorder %s20, 3
      %p119 = por %p117, %p118
      %p121 = scmp.ne.s32.totalorder %s104, %s120
      %p122 = scmp.eq.s32.totalorder %s20, 0
      %p123 = por %p121, %p122
      %s125 = sadd.s32 %s124, 1
      %p128 = scmp.eq.s32.totalorder %s14, 3
      %p129 = scmp.ne.s32.totalorder %s124, %s126
      %p130 = scmp.eq.s32.totalorder %s14, 0
      %p131 = por %p129, %p130
      %p132 = scmp.ne.s32.totalorder %s124, %s126
      %p133 = scmp.eq.s32.totalorder %s19, 3
      %p134 = por %p132, %p133
      %p135 = scmp.ne.s32.totalorder %s126, %s127
      %p136 = scmp.eq.s32.totalorder %s19, 0
      %p137 = por %p135, %p136
      %p138 = scmp.ne.s32.totalorder %s126, %s127
      %p139 = scmp.eq.s32.totalorder %s20, 3
      %p140 = por %p138, %p139
      %p142 = scmp.ne.s32.totalorder %s127, %s141
      %p143 = scmp.eq.s32.totalorder %s20, 0
      %p144 = por %p142, %p143
      %s146 = sadd.s32 %s145, 1
      %p149 = scmp.eq.s32.totalorder %s14, 3
      %p150 = scmp.ne.s32.totalorder %s145, %s147
      %p151 = scmp.eq.s32.totalorder %s14, 0
      %p152 = por %p150, %p151
      %p153 = scmp.ne.s32.totalorder %s145, %s147
      %p154 = scmp.eq.s32.totalorder %s19, 3
      %p155 = por %p153, %p154
      %p156 = scmp.ne.s32.totalorder %s147, %s148
      %p157 = scmp.eq.s32.totalorder %s19, 0
      %p158 = por %p156, %p157
      %p159 = scmp.ne.s32.totalorder %s147, %s148
      %p160 = scmp.eq.s32.totalorder %s20, 3
      %p161 = por %p159, %p160
      %p163 = scmp.ne.s32.totalorder %s148, %s162
      %p164 = scmp.eq.s32.totalorder %s20, 0
      %p165 = por %p163, %p164
      %s166 = ssub.s32 %s21, %s33
      %s167 = ssub.s32 %s22, %s29
      %s168 = sor.u32 %s166, %s167
      %p169 = scmp.eq.s32.totalorder %s168, 0
      %s171 = sadd.s32 %s170, 1
      %s172 = scalar_select %p169, %s170, %s171
      %p175 = pneg %p169
      %p176 = scmp.eq.s32.totalorder %s14, 3
      %p177 = por %p175, %p176
      %p178 = scmp.ne.s32.totalorder %s170, %s173
      %p179 = scmp.eq.s32.totalorder %s14, 0
      %p180 = por %p178, %p179
      %p181 = scmp.ne.s32.totalorder %s170, %s173
      %p182 = scmp.eq.s32.totalorder %s19, 3
      %p183 = por %p181, %p182
      %p184 = scmp.ne.s32.totalorder %s173, %s174
      %p185 = scmp.eq.s32.totalorder %s19, 0
      %p186 = por %p184, %p185
      %p187 = scmp.ne.s32.totalorder %s173, %s174
      %p188 = scmp.eq.s32.totalorder %s20, 3
      %p189 = por %p187, %p188
      %p191 = scmp.ne.s32.totalorder %s174, %s190
      %p192 = scmp.eq.s32.totalorder %s20, 0
      %p193 = por %p191, %p192
      %p194 = scmp.le.s32.totalorder 1, %s14
      %p195 = scmp.lt.s32.totalorder %s14, 5
      %p196 = pnand %p194, %p195
      %p197 = pneg %p196
      // Predicated region
      $region9: #{pallas_forward.3} parent=5 // pred_check
        _
      $region10: #{pallas_forward.3} parent=5 // pred_check_branch
        %199 = sbr.rel (%p196) target = $region12
      $region11: #{pallas_forward.3} parent=5 // pred_region
        %s200 = ssub.s32 %s14, 1
        // Predicated region
        $region13: #{pallas_forward.3} parent=11 // pred_check
          %p201 = pneg %p137
        $region14: #{pallas_forward.3} parent=11 // pred_check_branch
          %203 = sbr.rel (%p201) target = $region16
        $region15: #{pallas_forward.3} parent=11 // pred_region
          _
        $region16: #{pallas_forward.3} parent=11 // pred_fallthru
          _
        // Predicated region
        $region17: #{pallas_forward.3} parent=11 // pred_check
          %p204 = pneg %p158
        $region18: #{pallas_forward.3} parent=11 // pred_check_branch
          %206 = sbr.rel (%p204) target = $region20
        $region19: #{pallas_forward.3} parent=11 // pred_region
          _
        $region20: #{pallas_forward.3} parent=11 // pred_fallthru
          _
      $region12: #{pallas_forward.3} parent=5 // pred_fallthru
        _
      %p207 = scmp.lt.s32.totalorder %s14, 4
      // Predicated region
      $region21: #{pallas_forward.3} parent=5 // pred_check
        %p208 = pneg %p207
      $region22: #{pallas_forward.3} parent=5 // pred_check_branch
        %210 = sbr.rel (%p208) target = $region24
      $region23: #{pallas_forward.3} parent=5 // pred_region
        // Predicated region
        $region25: #{pallas_forward.3} parent=23 // pred_check
          %p211 = pneg %p48
        $region26: #{pallas_forward.3} parent=23 // pred_check_branch
          %213 = sbr.rel (%p211) target = $region28
        $region27: #{pallas_forward.3} parent=23 // pred_region
          %p214 = scmp.lt.s32.totalorder %s21, 1
          %s215 = scalar_select %p214, %s21, 1
          %p216 = scmp.lt.s32.totalorder %s22, 1
          %s217 = scalar_select %p216, %s22, 1
          %s218 = smul.addr %s215, 2
          %s219 = sadd.s32 %s217, %s218
          %s220 = smul.addr %s219, 4
          %s221 = scalar_lea.vmem %s0, %s220
        $region28: #{pallas_forward.3} parent=23 // pred_fallthru
          _
        // Predicated region
        $region29: #{pallas_forward.3} parent=23 // pred_check
          %p222 = pneg %p82
        $region30: #{pallas_forward.3} parent=23 // pred_check_branch
          %224 = sbr.rel (%p222) target = $region32
        $region31: #{pallas_forward.3} parent=23 // pred_region
          %p225 = scmp.eq.s32.totalorder %s22, 0
          %p226 = scmp.eq.s32.totalorder %s22, 1
          %s227 = scalar_select %p226, 2, 1
          %s228 = scalar_select %p225, 0, %s227
          %p229 = scmp.lt.s32.totalorder %s228, 2
          %s230 = scalar_select %p229, %s228, 2
          %s231 = smul.addr %s230, 8
          %s232 = scalar_lea.vmem %s1, %s231
          %p233 = scmp.eq.s32.totalorder %s22, 0
          %p234 = scmp.eq.s32.totalorder %s22, 1
          %s235 = scalar_select %p234, 2, 1
          %s236 = scalar_select %p233, 0, %s235
        $region32: #{pallas_forward.3} parent=23 // pred_fallthru
          _
        // Predicated region
        $region33: #{pallas_forward.3} parent=23 // pred_check
          %p237 = pneg %p110
        $region34: #{pallas_forward.3} parent=23 // pred_check_branch
          %239 = sbr.rel (%p237) target = $region36
        $region35: #{pallas_forward.3} parent=23 // pred_region
          %p240 = scmp.lt.s32.totalorder %s21, 1
          %s241 = scalar_select %p240, %s21, 1
          %p242 = scmp.lt.s32.totalorder %s22, 1
          %s243 = scalar_select %p242, %s22, 1
          %s244 = smul.addr %s241, 2
          %s245 = sadd.s32 %s243, %s244
          %s246 = smul.addr %s245, 8
          %s247 = scalar_lea.vmem %s2, %s246
        $region36: #{pallas_forward.3} parent=23 // pred_fallthru
          _
      $region24: #{pallas_forward.3} parent=5 // pred_fallthru
        _
      %p248 = scmp.le.s32.totalorder 1, %s14
      %p249 = scmp.lt.s32.totalorder %s14, 5
      %p250 = pnand %p248, %p249
      %p251 = pneg %p250
      // Predicated region
      $region37: #{pallas_forward.3} parent=5 // pred_check
        _
      $region38: #{pallas_forward.3} parent=5 // pred_check_branch
        %253 = sbr.rel (%p250) target = $region40
      $region39: #{pallas_forward.3} parent=5 // pred_region
        %s254 = ssub.s32 %s14, 1
        %p255 = scmp.lt.s32.totalorder %s23, 1
        %s256 = scalar_select %p255, %s23, 1
        %p257 = scmp.lt.s32.totalorder %s24, 1
        %s258 = scalar_select %p257, %s24, 1
        %s259 = smul.addr %s256, 2
        %s260 = sadd.s32 %s258, %s259
        %s261 = smul.addr %s260, 4
        %s262 = scalar_lea.vmem %s0, %s261
        %p263 = pneg %p54
        %p264 = pneg %p51
        %p265 = scmp.eq.s32.totalorder %s24, 0
        %p266 = scmp.eq.s32.totalorder %s24, 1
        %s267 = scalar_select %p266, 2, 1
        %s268 = scalar_select %p265, 0, %s267
        %p269 = scmp.lt.s32.totalorder %s268, 2
        %s270 = scalar_select %p269, %s268, 2
        %s271 = smul.addr %s270, 8
        %s272 = scalar_lea.vmem %s1, %s271
        %p273 = pneg %p88
        %p274 = pneg %p85
        %p275 = scmp.lt.s32.totalorder %s23, 1
        %s276 = scalar_select %p275, %s23, 1
        %p277 = scmp.lt.s32.totalorder %s24, 1
        %s278 = scalar_select %p277, %s24, 1
        %s279 = smul.addr %s276, 2
        %s280 = sadd.s32 %s278, %s279
        %s281 = smul.addr %s280, 8
        %s282 = scalar_lea.vmem %s2, %s281
        %p283 = pneg %p116
        %p284 = pneg %p113
        %p285 = pneg %p137
        %p286 = pneg %p134
        %p287 = pneg %p158
        %p288 = pneg %p155
        %p289 = pneg %p186
        %p290 = pneg %p183
        %s291 = sand.u32 %s173, 1
        %s292 = scalar_lea.sflag [#allocation4], %s291
        %s293 = sand.u32 %s173, 1
        %s294 = smul.addr %s293, 8
        %s295 = scalar_lea.vmem [#allocation3], %s294
        %p296 = scmp.lt.s32.totalorder %s23, 1
        %s297 = scalar_select %p296, %s23, 1
        %p298 = scmp.lt.s32.totalorder %s24, 1
        %s299 = scalar_select %p298, %s24, 1
        %s300 = smul.addr %s297, 2
        %s301 = sadd.s32 %s299, %s300
        %s302 = smul.addr %s301, 4
        %s303 = scalar_lea.vmem %s0, %s302
        %p304 = scmp.eq.s32.totalorder %s24, 0
        %p305 = scmp.eq.s32.totalorder %s24, 1
        %s306 = scalar_select %p305, 2, 1
        %s307 = scalar_select %p304, 0, %s306
        %p308 = scmp.lt.s32.totalorder %s307, 2
        %s309 = scalar_select %p308, %s307, 2
        %s310 = smul.addr %s309, 8
        %s311 = scalar_lea.vmem %s1, %s310
        %p312 = scmp.eq.s32.totalorder %s24, 0
        %p313 = scmp.eq.s32.totalorder %s24, 1
        %s314 = scalar_select %p313, 2, 1
        %s315 = scalar_select %p312, 0, %s314
        %p316 = scmp.lt.s32.totalorder %s23, 1
        %s317 = scalar_select %p316, %s23, 1
        %p318 = scmp.lt.s32.totalorder %s24, 1
        %s319 = scalar_select %p318, %s24, 1
        %s320 = smul.addr %s317, 2
        %s321 = sadd.s32 %s319, %s320
        %s322 = smul.addr %s321, 8
        %s323 = scalar_lea.vmem %s2, %s322
        %p325 = scmp.eq.s32.totalorder %s24, 0
        // Predicated region
        $region41: #{pallas_forward.3} parent=39 // pred_check
          %p326 = pneg %p325
        $region42: #{pallas_forward.3} parent=39 // pred_check_branch
          %328 = sbr.rel (%p326) target = $region44
        $region43: #{pallas_forward.3} parent=39 // pred_region
          %vm329 = vcmask 519168
          %330 = vst.msk [vmem:[#allocation2] sm:$0xf] %vm329, 0
        $region44: #{pallas_forward.3} parent=39 // pred_fallthru
          _
        %v331 = vld [vmem:[%s303] sm:$0xf]
        %v332 = vld [vmem:[#allocation2] sm:$0xf]
        %v334 = vunpack.c.l.b16 %v331
        %v335 = vpack.c.b16 %v334, %v334
        %336 = vrot.lane.b32.xlu0 %v335, 96
        %v337 = vpop.permute.xlu0 %336
        %vm338 = vcmask 1043456
        %v341 = vsel %vm338, %v332, %v337
        %v342 = vld [vmem:[%s311] sm:$0xff]
        %v343 = vld [vmem:[%s323] sm:$0xff]
        %v344 = vld [vmem:[%s4] sm:$0x1]
        %v346 = vlaneseq
        %v347 = vshrl.u32 %v346, 7
        %v348 = vsub.s32 0, %v347
        %v349 = vrot.slane %v344, %v348
        %v351 = vadd.f32 %v343, %v349
        %vm352 = vcmask 130048
        %v354 = vsel %vm352, %v331, 0
        %v356 = vsel %vm352, %v341, 0
        %358 = vmatprep.subr.bf16.mxu0 0
        %359 = vmatpush1.bf16.xpose.msra.mxu0 %v356
        %360 = vmatprep.subr.bf16.mxu0 0
        %361 = vmatpush1.bf16.xpose.msra.mxu0 0
        %362 = vmatprep.subr.bf16.mxu0 0
        %363 = vmatpush1.bf16.xpose.msra.mxu0 0
        %364 = vmatprep.subr.bf16.mxu0 0
        %365 = vmatpush1.bf16.xpose.msra.mxu0 0
        %366 = vmatprep.subr.bf16.mxu0 0
        %367 = vmatpush1.bf16.xpose.msra.mxu0 0
        %368 = vmatprep.subr.bf16.mxu0 0
        %369 = vmatpush1.bf16.xpose.msra.mxu0 0
        %370 = vmatprep.subr.bf16.mxu0 0
        %371 = vmatpush1.bf16.xpose.msra.mxu0 0
        %372 = vmatprep.subr.bf16.mxu0 0
        %373 = vmatpush1.bf16.xpose.msra.mxu0 0
        %374 = vmatprep.subr.bf16.mxu0 0
        %375 = vmatpush1.bf16.xpose.msra.mxu0 0
        %376 = vmatprep.subr.bf16.mxu0 0
        %377 = vmatpush1.bf16.xpose.msra.mxu0 0
        %378 = vmatprep.subr.bf16.mxu0 0
        %379 = vmatpush1.bf16.xpose.msra.mxu0 0
        %380 = vmatprep.subr.bf16.mxu0 0
        %381 = vmatpush1.bf16.xpose.msra.mxu0 0
        %382 = vmatprep.subr.bf16.mxu0 0
        %383 = vmatpush1.bf16.xpose.msra.mxu0 0
        %384 = vmatprep.subr.bf16.mxu0 0
        %385 = vmatpush1.bf16.xpose.msra.mxu0 0
        %386 = vmatprep.subr.bf16.mxu0 0
        %387 = vmatpush1.bf16.xpose.msra.mxu0 0
        %388 = vmatprep.subr.bf16.mxu0 0
        %389 = vmatpush1.bf16.xpose.msra.mxu0 0
        %390 = vmatprep.mubr.bf16.mxu0 0
        %391 = vmatmul.mubr.bf16.gmra.mrb[0].mxu0 %v354
        %v392 = vpop.f32.mrb[0].mxu0
        %v393 = vadd.f32 0.0, %v392
        %v394 = vpop.f32.mrb[0].mxu0
        %v395 = vpop.f32.mrb[0].mxu0
        %v396 = vpop.f32.mrb[0].mxu0
        %397 = vdwg.mxu0
        %v398 = vmul.f32 %v393, 0.25
        %v399 = vadd.f32 %v398, %v342
        %v400 = vsel %vm352, %v399, -inf
        %401 = vmax.xlane.f32.xlu0 %v400
        %v402 = vpop.xlane.xlu0 %401
        %v403 = vsub.f32 %v399, %v402
        %v404 = vmul.f32 %v403, 1.442695
        %v405 = vpow.pop %v404
        %v406 = vsel %vm352, %v405, 0.0
        %407 = vadd.xlane.f32.xlu0 %v406
        %v408 = vpop.xlane.xlu0 %407
        %v409 = vrcp.pop %v408
        %v410 = vpack.c.bf16 %v405, %v405
        %412 = vrot.lane.b32.xlu0 %v341, 96
        %v413 = vpop.permute.xlu0 %412
        %v416 = vsel %vm352, %v410, 0
        %418 = vmatprep.subr.bf16.mxu0 0
        %419 = vmatpush1.bf16.msra.mxu0 %v413
        %420 = vmatprep.subr.bf16.mxu0 0
        %421 = vmatpush1.bf16.msra.mxu0 0
        %422 = vmatprep.subr.bf16.mxu0 0
        %423 = vmatpush1.bf16.msra.mxu0 0
        %424 = vmatprep.subr.bf16.mxu0 0
        %425 = vmatpush1.bf16.msra.mxu0 0
        %426 = vmatprep.subr.bf16.mxu0 0
        %427 = vmatpush1.bf16.msra.mxu0 0
        %428 = vmatprep.subr.bf16.mxu0 0
        %429 = vmatpush1.bf16.msra.mxu0 0
        %430 = vmatprep.subr.bf16.mxu0 0
        %431 = vmatpush1.bf16.msra.mxu0 0
        %432 = vmatprep.subr.bf16.mxu0 0
        %433 = vmatpush1.bf16.msra.mxu0 0
        %434 = vmatprep.subr.bf16.mxu0 0
        %435 = vmatpush1.bf16.msra.mxu0 0
        %436 = vmatprep.subr.bf16.mxu0 0
        %437 = vmatpush1.bf16.msra.mxu0 0
        %438 = vmatprep.subr.bf16.mxu0 0
        %439 = vmatpush1.bf16.msra.mxu0 0
        %440 = vmatprep.subr.bf16.mxu0 0
        %441 = vmatpush1.bf16.msra.mxu0 0
        %442 = vmatprep.subr.bf16.mxu0 0
        %443 = vmatpush1.bf16.msra.mxu0 0
        %444 = vmatprep.subr.bf16.mxu0 0
        %445 = vmatpush1.bf16.msra.mxu0 0
        %446 = vmatprep.subr.bf16.mxu0 0
        %447 = vmatpush1.bf16.msra.mxu0 0
        %448 = vmatprep.subr.bf16.mxu0 0
        %449 = vmatpush1.bf16.msra.mxu0 0
        %450 = vmatprep.mubr.bf16.mxu0 0
        %451 = vmatmul.mubr.bf16.gmra.mrb[0].mxu0 %v416
        %v452 = vpop.f32.mrb[0].mxu0
        %v453 = vadd.f32 0.0, %v452
        %v454 = vpop.f32.mrb[0].mxu0
        %v455 = vpop.f32.mrb[0].mxu0
        %v456 = vpop.f32.mrb[0].mxu0
        %457 = vdwg.mxu0
        %v458 = vmul.f32 %v453, %v409
        %v459 = vpack.c.bf16 %v458, %v458
        %v460 = vld [vmem:[%s3] sm:$0xf]
        %v461 = vld [vmem:[%s3 + $0x4] sm:$0xf]
        %v464 = vunpack.c.l.b16 %v460
        %v465 = vunpack.c.l.b16 %v461
        %v466 = vpack.c.b16 %v465, %v464
        %v469 = vsel %vm352, %v459, 0
        %471 = vmatprep.subr.bf16.mxu0 0
        %472 = vmatpush1.bf16.msra.mxu0 %v466
        %473 = vmatprep.subr.bf16.mxu0 0
        %474 = vmatpush1.bf16.msra.mxu0 0
        %475 = vmatprep.subr.bf16.mxu0 0
        %476 = vmatpush1.bf16.msra.mxu0 0
        %477 = vmatprep.subr.bf16.mxu0 0
        %478 = vmatpush1.bf16.msra.mxu0 0
        %479 = vmatprep.subr.bf16.mxu0 0
        %480 = vmatpush1.bf16.msra.mxu0 0
        %481 = vmatprep.subr.bf16.mxu0 0
        %482 = vmatpush1.bf16.msra.mxu0 0
        %483 = vmatprep.subr.bf16.mxu0 0
        %484 = vmatpush1.bf16.msra.mxu0 0
        %485 = vmatprep.subr.bf16.mxu0 0
        %486 = vmatpush1.bf16.msra.mxu0 0
        %487 = vmatprep.subr.bf16.mxu0 0
        %488 = vmatpush1.bf16.msra.mxu0 0
        %489 = vmatprep.subr.bf16.mxu0 0
        %490 = vmatpush1.bf16.msra.mxu0 0
        %491 = vmatprep.subr.bf16.mxu0 0
        %492 = vmatpush1.bf16.msra.mxu0 0
        %493 = vmatprep.subr.bf16.mxu0 0
        %494 = vmatpush1.bf16.msra.mxu0 0
        %495 = vmatprep.subr.bf16.mxu0 0
        %496 = vmatpush1.bf16.msra.mxu0 0
        %497 = vmatprep.subr.bf16.mxu0 0
        %498 = vmatpush1.bf16.msra.mxu0 0
        %499 = vmatprep.subr.bf16.mxu0 0
        %500 = vmatpush1.bf16.msra.mxu0 0
        %501 = vmatprep.subr.bf16.mxu0 0
        %502 = vmatpush1.bf16.msra.mxu0 0
        %503 = vmatprep.mubr.bf16.mxu0 0
        %504 = vmatmul.mubr.bf16.gmra.mrb[0].mxu0 %v469
        %v505 = vpop.f32.mrb[0].mxu0
        %v506 = vadd.f32 0.0, %v505
        %v507 = vpop.f32.mrb[0].mxu0
        %v508 = vpop.f32.mrb[0].mxu0
        %v509 = vpop.f32.mrb[0].mxu0
        %510 = vdwg.mxu0
        %v511 = vadd.f32 %v351, %v506
        %512 = vrot.lane.b32.xlu0 %v335, 112
        %v513 = vpop.permute.xlu0 %512
        %514 = vrot.lane.b32.xlu0 %v341, 112
        %v515 = vpop.permute.xlu0 %514
        %v517 = vsel %vm352, %v513, 0
        %v520 = vsel %vm352, %v515, 0
        %522 = vmatprep.subr.bf16.mxu0 0
        %523 = vmatpush1.bf16.xpose.msra.mxu0 %v520
        %524 = vmatprep.subr.bf16.mxu0 0
        %525 = vmatpush1.bf16.xpose.msra.mxu0 0
        %526 = vmatprep.subr.bf16.mxu0 0
        %527 = vmatpush1.bf16.xpose.msra.mxu0 0
        %528 = vmatprep.subr.bf16.mxu0 0
        %529 = vmatpush1.bf16.xpose.msra.mxu0 0
        %530 = vmatprep.subr.bf16.mxu0 0
        %531 = vmatpush1.bf16.xpose.msra.mxu0 0
        %532 = vmatprep.subr.bf16.mxu0 0
        %533 = vmatpush1.bf16.xpose.msra.mxu0 0
        %534 = vmatprep.subr.bf16.mxu0 0
        %535 = vmatpush1.bf16.xpose.msra.mxu0 0
        %536 = vmatprep.subr.bf16.mxu0 0
        %537 = vmatpush1.bf16.xpose.msra.mxu0 0
        %538 = vmatprep.subr.bf16.mxu0 0
        %539 = vmatpush1.bf16.xpose.msra.mxu0 0
        %540 = vmatprep.subr.bf16.mxu0 0
        %541 = vmatpush1.bf16.xpose.msra.mxu0 0
        %542 = vmatprep.subr.bf16.mxu0 0
        %543 = vmatpush1.bf16.xpose.msra.mxu0 0
        %544 = vmatprep.subr.bf16.mxu0 0
        %545 = vmatpush1.bf16.xpose.msra.mxu0 0
        %546 = vmatprep.subr.bf16.mxu0 0
        %547 = vmatpush1.bf16.xpose.msra.mxu0 0
        %548 = vmatprep.subr.bf16.mxu0 0
        %549 = vmatpush1.bf16.xpose.msra.mxu0 0
        %550 = vmatprep.subr.bf16.mxu0 0
        %551 = vmatpush1.bf16.xpose.msra.mxu0 0
        %552 = vmatprep.subr.bf16.mxu0 0
        %553 = vmatpush1.bf16.xpose.msra.mxu0 0
        %554 = vmatprep.mubr.bf16.mxu0 0
        %555 = vmatmul.mubr.bf16.gmra.mrb[0].mxu0 %v517
        %v556 = vpop.f32.mrb[0].mxu0
        %v557 = vadd.f32 0.0, %v556
        %v558 = vpop.f32.mrb[0].mxu0
        %v559 = vpop.f32.mrb[0].mxu0
        %v560 = vpop.f32.mrb[0].mxu0
        %561 = vdwg.mxu0
        %v562 = vmul.f32 %v557, 0.25
        %v563 = vadd.f32 %v562, %v342
        %v564 = vsel %vm352, %v563, -inf
        %565 = vmax.xlane.f32.xlu0 %v564
        %v566 = vpop.xlane.xlu0 %565
        %v567 = vsub.f32 %v563, %v566
        %v568 = vmul.f32 %v567, 1.442695
        %v569 = vpow.pop %v568
        %v570 = vsel %vm352, %v569, 0.0
        %571 = vadd.xlane.f32.xlu0 %v570
        %v572 = vpop.xlane.xlu0 %571
        %v573 = vrcp.pop %v572
        %v574 = vpack.c.bf16 %v569, %v569
        %575 = vrot.lane.b32.xlu0 %v341, 80
        %v576 = vpop.permute.xlu0 %575
        %v579 = vsel %vm352, %v574, 0
        %581 = vmatprep.subr.bf16.mxu0 0
        %582 = vmatpush1.bf16.msra.mxu0 %v576
        %583 = vmatprep.subr.bf16.mxu0 0
        %584 = vmatpush1.bf16.msra.mxu0 0
        %585 = vmatprep.subr.bf16.mxu0 0
        %586 = vmatpush1.bf16.msra.mxu0 0
        %587 = vmatprep.subr.bf16.mxu0 0
        %588 = vmatpush1.bf16.msra.mxu0 0
        %589 = vmatprep.subr.bf16.mxu0 0
        %590 = vmatpush1.bf16.msra.mxu0 0
        %591 = vmatprep.subr.bf16.mxu0 0
        %592 = vmatpush1.bf16.msra.mxu0 0
        %593 = vmatprep.subr.bf16.mxu0 0
        %594 = vmatpush1.bf16.msra.mxu0 0
        %595 = vmatprep.subr.bf16.mxu0 0
        %596 = vmatpush1.bf16.msra.mxu0 0
        %597 = vmatprep.subr.bf16.mxu0 0
        %598 = vmatpush1.bf16.msra.mxu0 0
        %599 = vmatprep.subr.bf16.mxu0 0
        %600 = vmatpush1.bf16.msra.mxu0 0
        %601 = vmatprep.subr.bf16.mxu0 0
        %602 = vmatpush1.bf16.msra.mxu0 0
        %603 = vmatprep.subr.bf16.mxu0 0
        %604 = vmatpush1.bf16.msra.mxu0 0
        %605 = vmatprep.subr.bf16.mxu0 0
        %606 = vmatpush1.bf16.msra.mxu0 0
        %607 = vmatprep.subr.bf16.mxu0 0
        %608 = vmatpush1.bf16.msra.mxu0 0
        %609 = vmatprep.subr.bf16.mxu0 0
        %610 = vmatpush1.bf16.msra.mxu0 0
        %611 = vmatprep.subr.bf16.mxu0 0
        %612 = vmatpush1.bf16.msra.mxu0 0
        %613 = vmatprep.mubr.bf16.mxu0 0
        %614 = vmatmul.mubr.bf16.gmra.mrb[0].mxu0 %v579
        %v615 = vpop.f32.mrb[0].mxu0
        %v616 = vadd.f32 0.0, %v615
        %v617 = vpop.f32.mrb[0].mxu0
        %v618 = vpop.f32.mrb[0].mxu0
        %v619 = vpop.f32.mrb[0].mxu0
        %620 = vdwg.mxu0
        %v621 = vmul.f32 %v616, %v573
        %v622 = vpack.c.bf16 %v621, %v621
        %v623 = vld [vmem:[%s3 + $0x8] sm:$0xf]
        %v624 = vld [vmem:[%s3 + $0xc] sm:$0xf]
        %v627 = vunpack.c.l.b16 %v623
        %v628 = vunpack.c.l.b16 %v624
        %v629 = vpack.c.b16 %v628, %v627
        %v632 = vsel %vm352, %v622, 0
        %634 = vmatprep.subr.bf16.mxu0 0
        %635 = vmatpush1.bf16.msra.mxu0 %v629
        %636 = vmatprep.subr.bf16.mxu0 0
        %637 = vmatpush1.bf16.msra.mxu0 0
        %638 = vmatprep.subr.bf16.mxu0 0
        %639 = vmatpush1.bf16.msra.mxu0 0
        %640 = vmatprep.subr.bf16.mxu0 0
        %641 = vmatpush1.bf16.msra.mxu0 0
        %642 = vmatprep.subr.bf16.mxu0 0
        %643 = vmatpush1.bf16.msra.mxu0 0
        %644 = vmatprep.subr.bf16.mxu0 0
        %645 = vmatpush1.bf16.msra.mxu0 0
        %646 = vmatprep.subr.bf16.mxu0 0
        %647 = vmatpush1.bf16.msra.mxu0 0
        %648 = vmatprep.subr.bf16.mxu0 0
        %649 = vmatpush1.bf16.msra.mxu0 0
        %650 = vmatprep.subr.bf16.mxu0 0
        %651 = vmatpush1.bf16.msra.mxu0 0
        %652 = vmatprep.subr.bf16.mxu0 0
        %653 = vmatpush1.bf16.msra.mxu0 0
        %654 = vmatprep.subr.bf16.mxu0 0
        %655 = vmatpush1.bf16.msra.mxu0 0
        %656 = vmatprep.subr.bf16.mxu0 0
        %657 = vmatpush1.bf16.msra.mxu0 0
        %658 = vmatprep.subr.bf16.mxu0 0
        %659 = vmatpush1.bf16.msra.mxu0 0
        %660 = vmatprep.subr.bf16.mxu0 0
        %661 = vmatpush1.bf16.msra.mxu0 0
        %662 = vmatprep.subr.bf16.mxu0 0
        %663 = vmatpush1.bf16.msra.mxu0 0
        %664 = vmatprep.subr.bf16.mxu0 0
        %665 = vmatpush1.bf16.msra.mxu0 0
        %666 = vmatprep.mubr.bf16.mxu0 0
        %667 = vmatmul.mubr.bf16.gmra.mrb[0].mxu0 %v632
        %v668 = vpop.f32.mrb[0].mxu0
        %v669 = vadd.f32 0.0, %v668
        %v670 = vpop.f32.mrb[0].mxu0
        %v671 = vpop.f32.mrb[0].mxu0
        %v672 = vpop.f32.mrb[0].mxu0
        %673 = vdwg.mxu0
        %v674 = vadd.f32 %v511, %v669
        %vm675 = vcmask 261120
        %676 = vst.msk [vmem:[%s295] sm:$0xff] %vm675, %v674
        %677 = vrot.lane.b32.xlu0 %v331, 96
        %v678 = vpop.permute.xlu0 %677
        %vm680 = vcmask 519168
        %681 = vst.msk [vmem:[#allocation2] sm:$0xf] %vm680, %v678
        %s682 = sand.u32 %s173, 1
        %s683 = scalar_lea.sflag [#allocation4], %s682
        %s684 = sand.u32 %s173, 1
        %s685 = smul.addr %s684, 8
        %s686 = scalar_lea.vmem [#allocation3], %s685
        // Predicated region
        $region45: #{pallas_forward.3} parent=39 // pred_check
          %p687 = pneg %p183
        $region46: #{pallas_forward.3} parent=39 // pred_check_branch
          %689 = sbr.rel (%p687) target = $region48
        $region47: #{pallas_forward.3} parent=39 // pred_region
          %s691 = ssub.s32 128, 128
          %692 = vsyncadd %s683, %s691
          %s693 = smul.addr %s23, 2
          %s694 = sadd.s32 %s24, %s693
          %s695 = smul.addr %s694, 128
          %s696 = scalar_lea.hbm %s5, %s695
          %s698 = sshll.u32 %s686, 4
          %s699 = int_to_ptr.vmem [resolvable:$true] %s698
          %701 = dma.vmem_to_hbm [thread:$0]  %s699, 128, %s696, %s683
        $region48: #{pallas_forward.3} parent=39 // pred_fallthru
          _
      $region40: #{pallas_forward.3} parent=5 // pred_fallthru
        _
      %p702 = scmp.le.s32.totalorder 2, %s14
      // Predicated region
      $region49: #{pallas_forward.3} parent=5 // pred_check
        %p703 = pneg %p702
      $region50: #{pallas_forward.3} parent=5 // pred_check_branch
        %705 = sbr.rel (%p703) target = $region52
      $region51: #{pallas_forward.3} parent=5 // pred_region
        %s706 = ssub.s32 %s14, 2
        // Predicated region
        $region53: #{pallas_forward.3} parent=51 // pred_check
          %p707 = pneg %p189
        $region54: #{pallas_forward.3} parent=51 // pred_check_branch
          %709 = sbr.rel (%p707) target = $region56
        $region55: #{pallas_forward.3} parent=51 // pred_region
          %s710 = sand.u32 %s174, 1
          %s711 = scalar_lea.sflag [#allocation4], %s710
          %s712 = sand.u32 %s174, 1
          %s713 = smul.addr %s712, 8
          %s714 = scalar_lea.vmem [#allocation3], %s713
          %715 = dma.done %s711, 128
        $region56: #{pallas_forward.3} parent=51 // pred_fallthru
          _
      $region52: #{pallas_forward.3} parent=5 // pred_fallthru
        _
    $region6: #{pallas_forward.3} parent=1 // loop_footer
      %s18 = sadd.s32 1, %s14
    $region7: #{pallas_forward.3} parent=1 // loop_footer_branch
      %13 = sbr.rel target = $region3
    $region8: #{pallas_forward.3} parent=1 // loop_exit
      _
    %716 = vsyncpa [#allocation4], 1
    %s717 = scalar_lea.sflag [#allocation4], 1
    %718 = vsyncpa %s717, 1

</llo_original>
